<compile_context>
chip_gen: v7x
topology: tpu7x:2x2x1
jax: 0.10.0
libtpu: 0.0.40
codegen_flags: <defaults>
</compile_context>

<pallas_src>
import functools
import math

import jax
import jax.numpy as jnp
from jax.experimental import pallas as pl
from jax.experimental.pallas import tpu as pltpu


def _round_up(x, m):
    return ((x + m - 1) // m) * m


def _default_vmem_limit():
    # ~80% of the per-core VMEM (leave compiler headroom), clamped to a safe
    # range: ~51 MiB on v7x (64 MiB/TC), ~102 MiB on v5e/v6e (128 MiB).
    try:
        cap = int(pltpu.get_tpu_info().vmem_capacity_bytes)
        return int(min(max(cap * 4 // 5, 48 * 1024 * 1024), 112 * 1024 * 1024))
    except Exception:
        return 48 * 1024 * 1024


_VMEM_LIMIT = _default_vmem_limit()


# ----------------------------------------------------------------------------
# Matmul + bias (Linear layers, 1x1 convs, fused QKV)
# ----------------------------------------------------------------------------
def _matmul_bias_kernel(x_ref, w_ref, b_ref, o_ref, acc_ref):
    @pl.when(pl.program_id(2) == 0)
    def _():
        acc_ref[...] = jnp.zeros_like(acc_ref)

    acc_ref[...] += jnp.dot(x_ref[...], w_ref[...],
                            preferred_element_type=jnp.float32)

    @pl.when(pl.program_id(2) == pl.num_programs(2) - 1)
    def _():
        o_ref[...] = (acc_ref[...] + b_ref[...]).astype(o_ref.dtype)


def matmul_bias(x, w, b, out_dtype=jnp.bfloat16,
                tile_m=512, tile_k=512, tile_n=512):
    """out = x @ w + b with x:(M,K), w:(K,N).  bf16 MXU operands, f32 accumulate,
    M/N parallel grid axes, K reduction axis with a VMEM accumulator.  Narrow
    outputs are lane-padded to 128 so stores stay dense."""
    M, K = x.shape
    N = w.shape[1]
    x = x.astype(jnp.bfloat16)
    w = w.astype(jnp.bfloat16)
    tm = min(tile_m, _round_up(M, 8))
    tk = K if K <= tile_k else tile_k
    Nl = _round_up(N, 128)                     # lane-dense output stores
    tn = Nl if Nl <= tile_n else tile_n
    Mp, Kp, Np = _round_up(M, tm), _round_up(K, tk), _round_up(Nl, tn)
    if (Mp, Kp) != (M, K):
        x = jnp.pad(x, ((0, Mp - M), (0, Kp - K)))
    if (Kp, Np) != (K, N):
        w = jnp.pad(w, ((0, Kp - K), (0, Np - N)))
    bias = jnp.pad(b.astype(jnp.float32), (0, Np - N)).reshape(1, Np)
    out = pl.pallas_call(
        _matmul_bias_kernel,
        out_shape=jax.ShapeDtypeStruct((Mp, Np), out_dtype),
        grid=(Mp // tm, Np // tn, Kp // tk),
        in_specs=[
            pl.BlockSpec((tm, tk), lambda i, j, k: (i, k)),
            pl.BlockSpec((tk, tn), lambda i, j, k: (k, j)),
            pl.BlockSpec((1, tn), lambda i, j, k: (0, j)),
        ],
        out_specs=pl.BlockSpec((tm, tn), lambda i, j, k: (i, j)),
        scratch_shapes=[pltpu.VMEM((tm, tn), jnp.float32)],
        compiler_params=pltpu.CompilerParams(
            dimension_semantics=("parallel", "parallel", "arbitrary"),
            vmem_limit_bytes=_VMEM_LIMIT),
    )(x, w, bias)
    if (Mp, Np) != (M, N):
        out = out[:M, :N]
    return out


# ----------------------------------------------------------------------------
# 3x3x3 CausalConv3d: H-tiled, rolling VMEM frame buffer, tap-decomposed MXU
# ----------------------------------------------------------------------------
def _pick_tile_h(H, Wp8, cin, cout):
    """Largest divisor of H whose conv working set fits the VMEM budget, while
    keeping >=2 H-tiles where possible (a parallel grid axis for v7x's 2 TCs)."""
    budget = _VMEM_LIMIT * 3 // 4
    cap = max(H // 2, 8)
    for th in (128, 64, 32, 16, 8, 4, 2, 1):
        if th > H or H % th != 0 or th > cap:
            continue
        need = (4 * (th + 3) * Wp8 * cin * 2      # 4 rolling frame windows (bf16)
                + 2 * th * Wp8 * cout * 2         # double-buffered output tile
                + 2 * 27 * cin * cout * 2)        # weights (assume 2 buffers)
        if need <= budget:
            return th
    return 1


def _conv3_kernel(x_hbm, w_ref, b_ref, o_ref, buf, sem,
                  *, Tp, Wp8, TH, THW, Cout):
    """One (frame, H-tile) of a 3x3x3 causal conv.

    Padded frames live in HBM (pl.ANY); a rolling 4-slot VMEM buffer holds the
    3 frames the current output frame needs plus a 1-deep prefetch of the next
    one, so each padded frame is DMA'd once per H-tile.  Spatial taps are row
    windows of the flattened (TH+3, Wp8) tile; the per-row accumulator stays in
    vregs (no big VMEM accumulator RMW traffic)."""
    bb = pl.program_id(0)
    h = pl.program_id(1)
    t = pl.program_id(2)
    win = THW * Wp8                              # flattened rows of one window
    row0 = h * TH * Wp8

    def frame_copy(frame_idx, slot):
        return pltpu.make_async_copy(
            x_hbm.at[bb, frame_idx, pl.ds(row0, win), :],
            buf.at[slot], sem.at[slot])

    @pl.when(t == 0)
    def _():
        for s in range(3):
            frame_copy(s, s).start()
        if Tp > 3:                               # static: 1-deep prefetch
            frame_copy(3, 3).start()
        for s in range(3):
            frame_copy(s, s).wait()

    @pl.when(t > 0)
    def _():
        # padded frame t+2 was prefetched one step earlier; wait for it, then
        # start prefetching frame t+3 (if it exists) into its slot.
        frame_copy(0, (t + 2) & 3).wait()

        @pl.when(t + 3 < Tp)
        def _():
            frame_copy(t + 3, (t + 3) & 3).start()

    frames = (buf.at[t & 3], buf.at[(t + 1) & 3], buf.at[(t + 2) & 3])
    bias = b_ref[...]                            # (1, Cout) f32

    def row_body(r, carry):
        base = pl.multiple_of(r * Wp8, 8)
        acc = jnp.zeros((Wp8, Cout), jnp.float32) + bias
        for dt in range(3):
            for dh in range(3):
                for dw in range(3):
                    patch = frames[dt][pl.ds(base + dh * Wp8 + dw, Wp8), :]
                    acc = acc + jnp.dot(patch, w_ref[dt * 9 + dh * 3 + dw],
                                        preferred_element_type=jnp.float32)
        o_ref[0, 0, pl.ds(base, Wp8), :] = acc.astype(o_ref.dtype)
        return carry

    jax.lax.fori_loop(0, TH, row_body, 0)


def causal_conv3d(x, w, b):
    """CausalConv3d(k=3): replicate-pad 2 frames in the past and 1 px spatially,
    zero-pad width to a lane-friendly multiple of 8, then per (frame, H-tile)
    run the tap-decomposed conv streaming frame windows through a rolling VMEM
    buffer.  x: (B,T,H,W,Cin) bf16, w: (27,Cin,Cout) ordered (kt,kh,kw), b: (Cout,).
    """
    B, T, H, W, Cin = x.shape
    Cout = w.shape[-1]
    x = x.astype(jnp.bfloat16)
    Wp8 = _round_up(W + 2, 8)
    # TODO(synk): move the replicate/zero padding into the kernel (clamped DMA
    # row indices) to avoid one full padded-activation round trip per conv.
    xp = jnp.pad(x, ((0, 0), (2, 0), (1, 1), (1, 1), (0, 0)), mode='edge')
    xp = jnp.pad(xp, ((0, 0), (0, 0), (0, 1), (0, Wp8 - (W + 2)), (0, 0)))
    Tp, Hp = T + 2, H + 3
    xf = xp.reshape(B, Tp, Hp * Wp8, Cin)

    TH = _pick_tile_h(H, Wp8, Cin, Cout)
    NH = H // TH
    THW = TH + 3
    kern = functools.partial(_conv3_kernel, Tp=Tp, Wp8=Wp8, TH=TH, THW=THW,
                             Cout=Cout)
    out = pl.pallas_call(
        kern,
        out_shape=jax.ShapeDtypeStruct((B, T, H * Wp8, Cout), jnp.bfloat16),
        grid=(B, NH, T),
        in_specs=[
            pl.BlockSpec(memory_space=pl.ANY),                     # padded frames stay in HBM
            pl.BlockSpec((27, Cin, Cout), lambda bb, h, t: (0, 0, 0)),
            pl.BlockSpec((1, Cout), lambda bb, h, t: (0, 0)),
        ],
        out_specs=pl.BlockSpec((1, 1, TH * Wp8, Cout),
                               lambda bb, h, t: (bb, t, h, 0)),
        scratch_shapes=[
            pltpu.VMEM((4, THW * Wp8, Cin), jnp.bfloat16),          # rolling frame windows
            pltpu.SemaphoreType.DMA((4,)),
        ],
        compiler_params=pltpu.CompilerParams(
            dimension_semantics=("parallel", "parallel", "arbitrary"),
            vmem_limit_bytes=_VMEM_LIMIT),
    )(xf, w.astype(jnp.bfloat16), b.astype(jnp.float32).reshape(1, Cout))
    return out.reshape(B, T, H, Wp8, Cout)[:, :, :, :W, :]


# ----------------------------------------------------------------------------
# GroupNorm (+ fused SiLU): two-pass, N-tiled
# ----------------------------------------------------------------------------
def _gn_stats_kernel(x_ref, a_ref, at_ref, mean_ref, inv_ref, s1_ref, s2_ref,
                     *, eps, n_per_group):
    @pl.when(pl.program_id(1) == 0)
    def _():
        s1_ref[...] = jnp.zeros_like(s1_ref)
        s2_ref[...] = jnp.zeros_like(s2_ref)

    x = x_ref[0].astype(jnp.float32)                              # (tn, C)
    s1_ref[...] += jnp.sum(x, axis=0, keepdims=True)
    s2_ref[...] += jnp.sum(x * x, axis=0, keepdims=True)

    @pl.when(pl.program_id(1) == pl.num_programs(1) - 1)
    def _():
        a = a_ref[...]                                            # (C, G) one-hot
        at = at_ref[...]                                          # (G, C)
        mean_g = jnp.dot(s1_ref[...], a,
                         preferred_element_type=jnp.float32) / n_per_group
        msq_g = jnp.dot(s2_ref[...], a,
                        preferred_element_type=jnp.float32) / n_per_group
        var_g = jnp.maximum(msq_g - mean_g * mean_g, 0.0)         # biased, like torch
        inv_g = jax.lax.rsqrt(var_g + eps)
        mean_ref[0] = jnp.dot(mean_g, at, preferred_element_type=jnp.float32)
        inv_ref[0] = jnp.dot(inv_g, at, preferred_element_type=jnp.float32)


def _gn_apply_kernel(x_ref, mean_ref, inv_ref, g_ref, b_ref, o_ref, *, silu):
    x = x_ref[0].astype(jnp.float32)                              # (tn, C)
    y = (x - mean_ref[0]) * inv_ref[0] * g_ref[...] + b_ref[...]
    if silu:
        y = y * jax.nn.sigmoid(y)
    o_ref[0] = y.astype(o_ref.dtype)


def group_norm(x, gamma, beta, groups, eps, silu, tile_n=2048):
    """Channel-last GroupNorm over (B, N, C) with optional fused SiLU.
    Pass 1 accumulates per-channel sums over N tiles; pass 2 normalizes."""
    # TODO(synk): fuse the apply(+SiLU) pass into the consumer conv's input path
    # (pass mean/inv/gamma/beta as small extras) to save one activation round trip.
    # TODO(synk): split the stats N axis into (parallel, arbitrary) with a partial
    # -sum combine so both v7x TensorCores are busy when B == 1.
    B, N, C = x.shape
    cg = C // groups
    x = x.astype(jnp.bfloat16)
    tn = min(tile_n, _round_up(N, 8))
    Np = _round_up(N, tn)
    if Np != N:
        x = jnp.pad(x, ((0, 0), (0, Np - N), (0, 0)))             # zero rows: no effect on sums
    nt = Np // tn
    a = (jnp.arange(C)[:, None] // cg ==
         jnp.arange(groups)[None, :]).astype(jnp.float32)
    stats = functools.partial(_gn_stats_kernel, eps=float(eps),
                              n_per_group=float(N * cg))
    mean_c, inv_c = pl.pallas_call(
        stats,
        out_shape=(jax.ShapeDtypeStruct((B, 1, C), jnp.float32),
                   jax.ShapeDtypeStruct((B, 1, C), jnp.float32)),
        grid=(B, nt),
        in_specs=[pl.BlockSpec((1, tn, C), lambda bb, i: (bb, i, 0)),
                  pl.BlockSpec((C, groups), lambda bb, i: (0, 0)),
                  pl.BlockSpec((groups, C), lambda bb, i: (0, 0))],
        out_specs=(pl.BlockSpec((1, 1, C), lambda bb, i: (bb, 0, 0)),
                   pl.BlockSpec((1, 1, C), lambda bb, i: (bb, 0, 0))),
        scratch_shapes=[pltpu.VMEM((1, C), jnp.float32),
                        pltpu.VMEM((1, C), jnp.float32)],
        compiler_params=pltpu.CompilerParams(
            dimension_semantics=("parallel", "arbitrary"),
            vmem_limit_bytes=_VMEM_LIMIT),
    )(x, a, a.T)
    apply = functools.partial(_gn_apply_kernel, silu=silu)
    y = pl.pallas_call(
        apply,
        out_shape=jax.ShapeDtypeStruct((B, Np, C), jnp.bfloat16),
        grid=(B, nt),
        in_specs=[pl.BlockSpec((1, tn, C), lambda bb, i: (bb, i, 0)),
                  pl.BlockSpec((1, 1, C), lambda bb, i: (bb, 0, 0)),
                  pl.BlockSpec((1, 1, C), lambda bb, i: (bb, 0, 0)),
                  pl.BlockSpec((1, C), lambda bb, i: (0, 0)),
                  pl.BlockSpec((1, C), lambda bb, i: (0, 0))],
        out_specs=pl.BlockSpec((1, tn, C), lambda bb, i: (bb, i, 0)),
        compiler_params=pltpu.CompilerParams(
            dimension_semantics=("parallel", "parallel"),
            vmem_limit_bytes=_VMEM_LIMIT),
    )(x, mean_c, inv_c,
      gamma.astype(jnp.float32).reshape(1, C),
      beta.astype(jnp.float32).reshape(1, C))
    return y[:, :N] if Np != N else y


# ----------------------------------------------------------------------------
# Flash-style attention with in-kernel causal-frame mask & dead-block skipping
# ----------------------------------------------------------------------------
def _flash_attn_kernel(q_ref, k_ref, v_ref, o_ref, m_sc, l_sc, acc_sc,
                       *, n_hw, tq, tkv):
    qi = pl.program_id(1)
    ki = pl.program_id(2)

    @pl.when(ki == 0)
    def _():
        m_sc[...] = jnp.full_like(m_sc, -1e30)
        l_sc[...] = jnp.zeros_like(l_sc)
        acc_sc[...] = jnp.zeros_like(acc_sc)

    last_q_frame = ((qi + 1) * tq - 1) // n_hw
    first_k_frame = (ki * tkv) // n_hw

    @pl.when(first_k_frame <= last_q_frame)                       # skip dead KV blocks
    def _():
        q = q_ref[0]                                              # (tq, D) bf16 (pre-scaled)
        k = k_ref[0]                                              # (tkv, D) bf16
        s = jax.lax.dot_general(q, k, (((1,), (1,)), ((), ())),
                                preferred_element_type=jnp.float32)
        q_frame = (qi * tq
                   + jax.lax.broadcasted_iota(jnp.int32, (tq, 1), 0)) // n_hw
        k_frame = (ki * tkv
                   + jax.lax.broadcasted_iota(jnp.int32, (1, tkv), 1)) // n_hw
        s = jnp.where(k_frame <= q_frame, s, -1e30)               # key frame <= query frame
        m_prev = m_sc[...]
        m_new = jnp.maximum(m_prev, jnp.max(s, axis=-1, keepdims=True))
        alpha = jnp.exp(m_prev - m_new)
        p = jnp.exp(s - m_new)
        l_sc[...] = alpha * l_sc[...] + jnp.sum(p, axis=-1, keepdims=True)
        acc_sc[...] = alpha * acc_sc[...] + jnp.dot(
            p.astype(jnp.bfloat16), v_ref[0], preferred_element_type=jnp.float32)
        m_sc[...] = m_new

    @pl.when(ki == pl.num_programs(2) - 1)
    def _():
        o_ref[0] = (acc_sc[...] * pl.reciprocal(l_sc[...], approx=True)
                    ).astype(o_ref.dtype)


def attention_sdpa(q, k, v, n_hw, tile_q=256, tile_kv=512):
    """Matches F.scaled_dot_product_attention with the HunyuanVideo causal-frame
    mask (built in-kernel, never an (S,S) array in HBM).  q,k,v: (BH,S,D); the
    1/sqrt(D) scale must already be folded into q.  Fully-masked KV blocks are
    skipped and their DMAs suppressed by clamping the K/V index_maps."""
    BH, S, D = q.shape
    tq = min(tile_q, _round_up(S, 8))
    tkv = min(tile_kv, _round_up(S, 8))
    Sq, Sk = _round_up(S, tq), _round_up(S, tkv)
    if Sq != S:
        q = jnp.pad(q, ((0, 0), (0, Sq - S), (0, 0)))
    if Sk != S:
        k = jnp.pad(k, ((0, 0), (0, Sk - S), (0, 0)))
        v = jnp.pad(v, ((0, 0), (0, Sk - S), (0, 0)))
    ntq, ntk = Sq // tq, Sk // tkv

    def kv_map(b, qi, ki):
        # Clamp dead KV blocks to the last useful one: repeated block indices
        # let the pipeline skip their DMAs entirely.
        last_q_frame = ((qi + 1) * tq - 1) // n_hw
        ki_max = ((last_q_frame + 1) * n_hw - 1) // tkv
        return (b, jnp.minimum(ki, ki_max), 0)

    kern = functools.partial(_flash_attn_kernel, n_hw=n_hw, tq=tq, tkv=tkv)
    out = pl.pallas_call(
        kern,
        out_shape=jax.ShapeDtypeStruct((BH, Sq, D), jnp.bfloat16),
        grid=(BH, ntq, ntk),
        in_specs=[pl.BlockSpec((1, tq, D), lambda b, qi, ki: (b, qi, 0)),
                  pl.BlockSpec((1, tkv, D), kv_map),
                  pl.BlockSpec((1, tkv, D), kv_map)],
        out_specs=pl.BlockSpec((1, tq, D), lambda b, qi, ki: (b, qi, 0)),
        scratch_shapes=[pltpu.VMEM((tq, 1), jnp.float32),
                        pltpu.VMEM((tq, 1), jnp.float32),
                        pltpu.VMEM((tq, D), jnp.float32)],
        compiler_params=pltpu.CompilerParams(
            dimension_semantics=("parallel", "parallel", "arbitrary"),
            vmem_limit_bytes=_VMEM_LIMIT),
    )(q.astype(jnp.bfloat16), k.astype(jnp.bfloat16), v.astype(jnp.bfloat16))
    return out[:, :S] if Sq != S else out


# ----------------------------------------------------------------------------
# Module building blocks
# ----------------------------------------------------------------------------
def resnet_block(x, p, groups, eps):
    B, T, H, W, C = x.shape
    h = group_norm(x.reshape(B, -1, C), p['norm1_g'], p['norm1_b'],
                   groups, eps, silu=True).reshape(B, T, H, W, C)
    h = causal_conv3d(h, p['conv1_w'], p['conv1_b'])
    Co = p['conv1_b'].shape[0]
    h = group_norm(h.reshape(B, -1, Co), p['norm2_g'], p['norm2_b'],
                   groups, eps, silu=True).reshape(B, T, H, W, Co)
    # dropout is identity in eval mode
    h = causal_conv3d(h, p['conv2_w'], p['conv2_b'])
    if 'short_w' in p:
        x = matmul_bias(x.reshape(B * T * H * W, C), p['short_w'],
                        p['short_b']).reshape(B, T, H, W, Co)
    # TODO(synk): fuse this residual add into the conv2 epilogue (skip tensor as
    # an extra input tiled like the conv output) to save one HBM round trip.
    return x + h


def attention_block(x, p, groups, eps, num_heads, head_dim):
    B, T, H, W, C = x.shape
    S = T * H * W
    n_hw = H * W
    xs = x.reshape(B, S, C)
    hn = group_norm(xs, p['gn_g'], p['gn_b'], groups, eps, silu=False)
    hf = hn.reshape(B * S, C)
    dim_inner = num_heads * head_dim

    # Fused QKV projection (one read of the normalized activation, lane-dense
    # output); the 1/sqrt(d) attention scale is folded into the Q weights.
    scale = 1.0 / math.sqrt(head_dim)
    wqkv = jnp.concatenate([p['wq'].astype(jnp.float32) * scale,
                            p['wk'].astype(jnp.float32),
                            p['wv'].astype(jnp.float32)], axis=1)
    bqkv = jnp.concatenate([p['bq'].astype(jnp.float32) * scale,
                            p['bk'].astype(jnp.float32),
                            p['bv'].astype(jnp.float32)])
    qkv = matmul_bias(hf, wqkv, bqkv)                              # (B*S, 3*dim_inner)

    def split_heads(z):
        return (z.reshape(B, S, num_heads, head_dim)
                 .transpose(0, 2, 1, 3).reshape(B * num_heads, S, head_dim))

    q = split_heads(qkv[:, :dim_inner])
    k = split_heads(qkv[:, dim_inner:2 * dim_inner])
    v = split_heads(qkv[:, 2 * dim_inner:])

    o = attention_sdpa(q, k, v, n_hw)
    o = (o.reshape(B, num_heads, S, head_dim).transpose(0, 2, 1, 3)
          .reshape(B * S, dim_inner))
    o = matmul_bias(o, p['wo'], p['bo']).reshape(B, S, C)
    return (xs + o).reshape(B, T, H, W, C)


def mid_block(x, p, groups, eps, attention_head_dim):
    x = resnet_block(x, p['resnets'][0], groups, eps)
    for attn_p, res_p in zip(p['attentions'], p['resnets'][1:]):
        C = x.shape[-1]
        num_heads = C // attention_head_dim
        x = attention_block(x, attn_p, groups, eps, num_heads, attention_head_dim)
        x = resnet_block(x, res_p, groups, eps)
    return x


def upsample_nearest_causal(x, factor):
    """UpsampleCausal3D resize: first frame spatial-only, remaining frames full factor."""
    ft, fh, fw = factor
    B, T, H, W, C = x.shape

    def up_hw(y):
        y = jnp.repeat(y, fh, axis=2)
        y = jnp.repeat(y, fw, axis=3)
        return y

    first = up_hw(x[:, :1])
    if T > 1:
        rest = jnp.repeat(up_hw(x[:, 1:]), ft, axis=1)
        return jnp.concatenate([first, rest], axis=1)
    return first


def up_decoder_block(x, p, groups, eps):
    for rp in p['resnets']:
        x = resnet_block(x, rp, groups, eps)
    if 'upsample' in p:
        # TODO(synk): fold the nearest-neighbour repeat into the following conv's
        # tap addressing (read source row h//fh) to avoid materializing the
        # upsampled tensor in HBM.
        x = upsample_nearest_causal(x, p['upsample_factor'])
        x = causal_conv3d(x, p['upsample']['w'], p['upsample']['b'])
    return x


def decoder_causal3d_forward(x, params, *, num_groups, eps, attention_head_dim):
    """DecoderCausal3D on channel-last (B, T, H, W, C) bf16 activations."""
    x = causal_conv3d(x, params['conv_in_w'], params['conv_in_b'])
    x = mid_block(x, params['mid'], num_groups, eps, attention_head_dim)
    for ub in params['up_blocks']:
        x = up_decoder_block(x, ub, num_groups, eps)
    B, T, H, W, C = x.shape
    x = group_norm(x.reshape(B, -1, C), params['norm_out_g'], params['norm_out_b'],
                   num_groups, eps, silu=True).reshape(B, T, H, W, C)  # conv_norm_out + conv_act
    x = causal_conv3d(x, params['conv_out_w'], params['conv_out_b'])
    return x


def hunyuan_vae_decoder_forward(latents_ncdhw, params, *, num_groups, eps,
                                attention_head_dim, scaling_factor=0.476986):
    """Full HunyuanVideoVAEDecoder.forward: scale, post_quant_conv (1x1x1), decoder.
    Accepts / returns PyTorch-style NCDHW."""
    x = latents_ncdhw.astype(jnp.float32) / scaling_factor         # scale in f32, like torch
    x = jnp.transpose(x, (0, 2, 3, 4, 1)).astype(jnp.bfloat16)
    B, T, H, W, C = x.shape
    x = matmul_bias(x.reshape(B * T * H * W, C), params['post_quant_w'],
                    params['post_quant_b']).reshape(B, T, H, W, C)
    x = decoder_causal3d_forward(x, params, num_groups=num_groups, eps=eps,
                                 attention_head_dim=attention_head_dim)
    return jnp.transpose(x, (0, 4, 1, 2, 3)).astype(jnp.float32)


# ----------------------------------------------------------------------------
# Deterministic parameter initialization (same shapes as the PyTorch module)
# ----------------------------------------------------------------------------
def init_decoder_params(key, *, in_channels=16, out_channels=3,
                        block_out_channels=(32, 32, 64, 64), layers_per_block=2,
                        num_groups=32, time_compression_ratio=4,
                        spatial_compression_ratio=8, eps=1e-6):
    counter = [0]

    def nk():
        counter[0] += 1
        return jax.random.fold_in(key, counter[0])

    def conv3_w(cin, cout):
        # layout (kt*9 + kh*3 + kw, cin, cout) == torch weight.permute(2,3,4,1,0)
        w = jax.random.normal(nk(), (27, cin, cout), jnp.float32) * 0.02
        return w.astype(jnp.bfloat16)

    def lin_w(cin, cout):
        return (jax.random.normal(nk(), (cin, cout), jnp.float32) * 0.02
                ).astype(jnp.bfloat16)

    def resnet_params(cin, cout):
        p = dict(
            norm1_g=jnp.ones((cin,), jnp.float32), norm1_b=jnp.zeros((cin,), jnp.float32),
            conv1_w=conv3_w(cin, cout), conv1_b=jnp.zeros((cout,), jnp.float32),
            norm2_g=jnp.ones((cout,), jnp.float32), norm2_b=jnp.zeros((cout,), jnp.float32),
            conv2_w=conv3_w(cout, cout), conv2_b=jnp.zeros((cout,), jnp.float32),
        )
        if cin != cout:
            p['short_w'] = lin_w(cin, cout)
            p['short_b'] = jnp.zeros((cout,), jnp.float32)
        return p

    c_last = block_out_channels[-1]
    attention_head_dim = c_last                     # mid_block default
    num_heads = c_last // attention_head_dim
    dim_inner = num_heads * attention_head_dim

    def attn_params(c):
        return dict(
            gn_g=jnp.ones((c,), jnp.float32), gn_b=jnp.zeros((c,), jnp.float32),
            wq=lin_w(c, dim_inner), bq=jnp.zeros((dim_inner,), jnp.float32),
            wk=lin_w(c, dim_inner), bk=jnp.zeros((dim_inner,), jnp.float32),
            wv=lin_w(c, dim_inner), bv=jnp.zeros((dim_inner,), jnp.float32),
            wo=lin_w(dim_inner, c), bo=jnp.zeros((c,), jnp.float32),
        )

    params = dict(
        post_quant_w=lin_w(in_channels, in_channels),
        post_quant_b=jnp.zeros((in_channels,), jnp.float32),
        conv_in_w=conv3_w(in_channels, c_last),
        conv_in_b=jnp.zeros((c_last,), jnp.float32),
        mid=dict(resnets=[resnet_params(c_last, c_last), resnet_params(c_last, c_last)],
                 attentions=[attn_params(c_last)]),
        up_blocks=[],
        norm_out_g=jnp.ones((block_out_channels[0],), jnp.float32),
        norm_out_b=jnp.zeros((block_out_channels[0],), jnp.float32),
        conv_out_w=conv3_w(block_out_channels[0], out_channels),
        conv_out_b=jnp.zeros((out_channels,), jnp.float32),
    )

    rev = list(reversed(block_out_channels))
    output_channel = rev[0]
    n_spatial = int(math.log2(spatial_compression_ratio))
    n_time = int(math.log2(time_compression_ratio))
    nb = len(block_out_channels)
    for i in range(nb):
        prev = output_channel
        output_channel = rev[i]
        is_final = (i == nb - 1)
        add_sp = i < n_spatial
        add_t = (i >= nb - 1 - n_time) and (not is_final)
        factor = ((2,) if add_t else (1,)) + ((2, 2) if add_sp else (1, 1))
        resnets = []
        for j in range(layers_per_block + 1):
            cin = prev if j == 0 else output_channel
            resnets.append(resnet_params(cin, output_channel))
        ub = dict(resnets=resnets)
        if add_sp or add_t:
            ub['upsample_factor'] = factor
            ub['upsample'] = dict(w=conv3_w(output_channel, output_channel),
                                  b=jnp.zeros((output_channel,), jnp.float32))
        params['up_blocks'].append(ub)

    cfg = dict(num_groups=num_groups, eps=eps, attention_head_dim=attention_head_dim)
    return params, cfg


# ----------------------------------------------------------------------------
if __name__ == "__main__":
    key = jax.random.PRNGKey(0)
    pkey, xkey = jax.random.split(key)

    # Small but structurally faithful config: 4 up-blocks, GroupNorm(32 groups),
    # 3 resnets per up-block, mid block with single-head causal-frame attention.
    params, cfg = init_decoder_params(
        pkey, in_channels=16, out_channels=3,
        block_out_channels=(32, 32, 64, 64), layers_per_block=2,
        num_groups=32, time_compression_ratio=4, spatial_compression_ratio=8)

    # PyTorch-style NCDHW latent: (B=1, C=16, T=2, H=4, W=4)
    x = jax.random.normal(xkey, (1, 16, 2, 4, 4), jnp.float32)

    y = hunyuan_vae_decoder_forward(
        x, params,
        num_groups=cfg['num_groups'], eps=cfg['eps'],
        attention_head_dim=cfg['attention_head_dim'])
    y = jax.block_until_ready(y)

    # 8x spatial upsample (3 spatial up-blocks), time 2 -> 3 -> 5 (2 causal time up-blocks)
    assert y.shape == (1, 3, 5, 32, 32), y.shape
    assert bool(jnp.all(jnp.isfinite(y)))
    print("KERNEL_OK")
</pallas_src>

<mosaic_0001>
module attributes {stable_mosaic.version = 11 : i64} {
  func.func @_matmul_bias_kernel(%arg0: i32, %arg1: i32, %arg2: i32, %arg3: memref<32x16xbf16, #tpu.memory_space<vmem>>, %arg4: memref<16x128xbf16, #tpu.memory_space<vmem>>, %arg5: memref<1x128xf32, #tpu.memory_space<vmem>>, %arg6: memref<32x128xbf16, #tpu.memory_space<vmem>>, %arg7: memref<32x128xf32, #tpu.memory_space<vmem>>) attributes {dimension_semantics = [#tpu.dimension_semantics<parallel>, #tpu.dimension_semantics<parallel>, #tpu.dimension_semantics<arbitrary>], iteration_bounds = array<i64: 1, 1, 1>, scalar_prefetch = 0 : i64, scratch_operands = 1 : i64, tpu.core_type = #tpu.core_type<tc>, window_params = [{transform_indices = @transform_0, window_bounds = array<i64: 32, 16>}, {transform_indices = @transform_1, window_bounds = array<i64: 16, 128>}, {transform_indices = @transform_2, window_bounds = array<i64: 1, 128>}, {transform_indices = @transform_3, window_bounds = array<i64: 32, 128>}]} {
    %c0_i32 = arith.constant 0 : i32
    %0 = arith.cmpi eq, %arg2, %c0_i32 : i32
    %1 = arith.extui %0 : i1 to i32
    %c0_i32_0 = arith.constant 0 : i32
    %2 = arith.cmpi ne, %1, %c0_i32_0 : i32
    scf.if %2 {
      %cst_10 = arith.constant 0.000000e+00 : f32
      %12 = vector.broadcast %cst_10 : f32 to vector<32x128xf32>
      %c0_11 = arith.constant 0 : index
      %c0_12 = arith.constant 0 : index
      %13 = vector.load %arg7[%c0_11, %c0_12] : memref<32x128xf32, #tpu.memory_space<vmem>>, vector<32x128xf32>
      tpu.vector_store %arg7[%c0_11, %c0_12], %12 {strides = array<i32>} : memref<32x128xf32, #tpu.memory_space<vmem>>, vector<32x128xf32>,
    } else {
    }
    %c0 = arith.constant 0 : index
    %c0_1 = arith.constant 0 : index
    %3 = vector.load %arg7[%c0, %c0_1] : memref<32x128xf32, #tpu.memory_space<vmem>>, vector<32x128xf32>
    %c0_2 = arith.constant 0 : index
    %c0_3 = arith.constant 0 : index
    %4 = vector.load %arg3[%c0_2, %c0_3] : memref<32x16xbf16, #tpu.memory_space<vmem>>, vector<32x16xbf16>
    %c0_4 = arith.constant 0 : index
    %c0_5 = arith.constant 0 : index
    %5 = vector.load %arg4[%c0_4, %c0_5] : memref<16x128xbf16, #tpu.memory_space<vmem>>, vector<16x128xbf16>
    %cst = arith.constant dense<0.000000e+00> : vector<32x128xf32>
    %6 = tpu.matmul %4, %5, %cst {dimension_numbers = #tpu.dot_dimension_numbers<[1], [0], [0], [1], [0, 0, 1, 1], [], []>} : vector<32x16xbf16>, vector<16x128xbf16>, vector<32x128xf32> -> vector<32x128xf32>
    %7 = arith.addf %3, %6 : vector<32x128xf32>
    %c0_6 = arith.constant 0 : index
    %c0_7 = arith.constant 0 : index
    %8 = vector.load %arg7[%c0_6, %c0_7] : memref<32x128xf32, #tpu.memory_space<vmem>>, vector<32x128xf32>
    tpu.vector_store %arg7[%c0_6, %c0_7], %7 {strides = array<i32>} : memref<32x128xf32, #tpu.memory_space<vmem>>, vector<32x128xf32>,
    %c0_i32_8 = arith.constant 0 : i32
    %9 = arith.cmpi eq, %arg2, %c0_i32_8 : i32
    %10 = arith.extui %9 : i1 to i32
    %c0_i32_9 = arith.constant 0 : i32
    %11 = arith.cmpi ne, %10, %c0_i32_9 : i32
    scf.if %11 {
      %c0_10 = arith.constant 0 : index
      %c0_11 = arith.constant 0 : index
      %12 = vector.load %arg7[%c0_10, %c0_11] : memref<32x128xf32, #tpu.memory_space<vmem>>, vector<32x128xf32>
      %c0_12 = arith.constant 0 : index
      %c0_13 = arith.constant 0 : index
      %13 = vector.load %arg5[%c0_12, %c0_13] : memref<1x128xf32, #tpu.memory_space<vmem>>, vector<1x128xf32>
      %14 = vector.broadcast %13 : vector<1x128xf32> to vector<32x128xf32>
      %15 = arith.addf %12, %14 : vector<32x128xf32>
      %16 = arith.truncf %15 : vector<32x128xf32> to vector<32x128xbf16>
      %c0_14 = arith.constant 0 : index
      %c0_15 = arith.constant 0 : index
      %17 = vector.load %arg6[%c0_14, %c0_15] : memref<32x128xbf16, #tpu.memory_space<vmem>>, vector<32x128xbf16>
      tpu.vector_store %arg6[%c0_14, %c0_15], %16 {strides = array<i32>} : memref<32x128xbf16, #tpu.memory_space<vmem>>, vector<32x128xbf16>,
    } else {
    }
    return
  }
  func.func @transform_0(%arg0: i32, %arg1: i32, %arg2: i32) -> (i32, i32) {
    %c0_i32 = arith.constant 0 : i32
    return %arg0, %arg2 : i32, i32
  }
  func.func @transform_1(%arg0: i32, %arg1: i32, %arg2: i32) -> (i32, i32) {
    %c0_i32 = arith.constant 0 : i32
    return %arg2, %arg1 : i32, i32
  }
  func.func @transform_2(%arg0: i32, %arg1: i32, %arg2: i32) -> (i32, i32) {
    %c0_i32 = arith.constant 0 : i32
    %c0_i32_0 = arith.constant 0 : i32
    return %c0_i32, %arg1 : i32, i32
  }
  func.func @transform_3(%arg0: i32, %arg1: i32, %arg2: i32) -> (i32, i32) {
    %c0_i32 = arith.constant 0 : i32
    return %arg0, %arg1 : i32, i32
  }
}

</mosaic_0001>

<llo_original>
// kernel: tpu_custom_call.1
$region0: #{tpu_custom_call.1}
  #allocation0 [shape = 'u32[]', space=smem, size = 0x4, offset = 0x4, fixed_abs, tag = 'smem constant byte address 0x4 - core index']
  #allocation1 [shape = 'u32[144,128]{1,0:T(1,128)}', space=vmem, size = 0x12000, scoped, tag = 'internal scratch']
  #allocation2 [shape = 'f32[32,128]{1,0:T(8,128)}', space=vmem, size = 0x4000, scoped, tag = 'scratch operand']
  %s0 = inlined_call_operand.vmem [shape: bf16[32,16], index: 0, kind: input, shape index: {}]
  %s1 = inlined_call_operand.vmem [shape: bf16[16,128], index: 1, kind: input, shape index: {}]
  %s2 = inlined_call_operand.vmem [shape: f32[1,128], index: 2, kind: input, shape index: {}]
  %s3 = inlined_call_operand.hbm [shape: bf16[32,128], index: 3, kind: output, shape index: {}]
  %s4 = sld [smem:[#allocation0]]
  $region30: #{tpu_custom_call.1} parent=0
    _
  %s6 = ssub.s32 1, %s4
  %s7 = scalar_select 0, %s6, %s4
  $region1: #{tpu_custom_call.1} parent=0
    #allocation3 [shape = 'u8[8192]{0}', space=vmem, size = 0x2000, scoped, tag = 'output window, operand 0, single buffered']
    #allocation4 [shape = 's32[1]{0}', space=sflag, size = 0x4, scoped, tag = 'scoped memory for tpu_custom_call.1']
    %8 = vsyncpa [#allocation4], 0
    // Predicated region
    $region2: #{tpu_custom_call.1} parent=1 // pred_check
      _
    $region3: #{tpu_custom_call.1} parent=1 // pred_check_branch
      %10 = sbr.rel (0) target = $region5
    $region4: #{tpu_custom_call.1} parent=1 // pred_region
      _
    $region5: #{tpu_custom_call.1} parent=1 // pred_fallthru
      _
    // Predicated region
    $region6: #{tpu_custom_call.1} parent=1 // pred_check
      _
    $region7: #{tpu_custom_call.1} parent=1 // pred_check_branch
      %12 = sbr.rel (0) target = $region9
    $region8: #{tpu_custom_call.1} parent=1 // pred_region
      _
    $region9: #{tpu_custom_call.1} parent=1 // pred_fallthru
      _
    // Predicated region
    $region10: #{tpu_custom_call.1} parent=1 // pred_check
      _
    $region11: #{tpu_custom_call.1} parent=1 // pred_check_branch
      %14 = sbr.rel (0) target = $region13
    $region12: #{tpu_custom_call.1} parent=1 // pred_region
      _
    $region13: #{tpu_custom_call.1} parent=1 // pred_fallthru
      _
    %p16 = scmp.eq.s32.totalorder 0, 0
    // Predicated region
    $region14: #{tpu_custom_call.1} parent=1 // pred_check
      %p17 = pneg %p16
    $region15: #{tpu_custom_call.1} parent=1 // pred_check_branch
      %19 = sbr.rel (%p17) target = $region17
    $region16: #{tpu_custom_call.1} parent=1 // pred_region
      %20 = vst [vmem:[#allocation2] sm:$0xff] 0.0
      %21 = vst [vmem:[#allocation2 + $0x8] sm:$0xff] 0.0
      %22 = vst [vmem:[#allocation2 + $0x10] sm:$0xff] 0.0
      %23 = vst [vmem:[#allocation2 + $0x18] sm:$0xff] 0.0
    $region17: #{tpu_custom_call.1} parent=1 // pred_fallthru
      _
    %v24 = vld [vmem:[#allocation2] sm:$0xff]
    %v25 = vld [vmem:[#allocation2 + $0x8] sm:$0xff]
    %v26 = vld [vmem:[#allocation2 + $0x10] sm:$0xff]
    %v27 = vld [vmem:[#allocation2 + $0x18] sm:$0xff]
    %v28 = vld [vmem:[%s0] sm:$0xf]
    %v29 = vld [vmem:[%s0 + $0x4] sm:$0xf]
    %v30 = vld [vmem:[%s0 + $0x8] sm:$0xf]
    %v31 = vld [vmem:[%s0 + $0xc] sm:$0xf]
    %v32 = vld [vmem:[%s1] sm:$0xf]
    %v33 = vld [vmem:[%s1 + $0x4] sm:$0xf]
    %v38 = vunpack.c.l.b16 %v28
    %v39 = vunpack.c.l.b16 %v29
    %v40 = vunpack.c.l.b16 %v30
    %v41 = vunpack.c.l.b16 %v31
    %v42 = vpack.c.b16 %v39, %v38
    %v43 = vpack.c.b16 %v41, %v40
    %v46 = vunpack.c.l.b16 %v32
    %v47 = vunpack.c.l.b16 %v33
    %v48 = vpack.c.b16 %v47, %v46
    %vm50 = vcmask 130048
    %v52 = vsel %vm50, %v42, 0
    %v55 = vsel %vm50, %v43, 0
    %57 = vmatprep.subr.bf16.mxu0 0
    %58 = vmatpush1.bf16.msra.mxu0 %v48
    %59 = vmatprep.subr.bf16.mxu0 0
    %60 = vmatpush1.bf16.msra.mxu0 0
    %61 = vmatprep.subr.bf16.mxu0 0
    %62 = vmatpush1.bf16.msra.mxu0 0
    %63 = vmatprep.subr.bf16.mxu0 0
    %64 = vmatpush1.bf16.msra.mxu0 0
    %65 = vmatprep.subr.bf16.mxu0 0
    %66 = vmatpush1.bf16.msra.mxu0 0
    %67 = vmatprep.subr.bf16.mxu0 0
    %68 = vmatpush1.bf16.msra.mxu0 0
    %69 = vmatprep.subr.bf16.mxu0 0
    %70 = vmatpush1.bf16.msra.mxu0 0
    %71 = vmatprep.subr.bf16.mxu0 0
    %72 = vmatpush1.bf16.msra.mxu0 0
    %73 = vmatprep.subr.bf16.mxu0 0
    %74 = vmatpush1.bf16.msra.mxu0 0
    %75 = vmatprep.subr.bf16.mxu0 0
    %76 = vmatpush1.bf16.msra.mxu0 0
    %77 = vmatprep.subr.bf16.mxu0 0
    %78 = vmatpush1.bf16.msra.mxu0 0
    %79 = vmatprep.subr.bf16.mxu0 0
    %80 = vmatpush1.bf16.msra.mxu0 0
    %81 = vmatprep.subr.bf16.mxu0 0
    %82 = vmatpush1.bf16.msra.mxu0 0
    %83 = vmatprep.subr.bf16.mxu0 0
    %84 = vmatpush1.bf16.msra.mxu0 0
    %85 = vmatprep.subr.bf16.mxu0 0
    %86 = vmatpush1.bf16.msra.mxu0 0
    %87 = vmatprep.subr.bf16.mxu0 0
    %88 = vmatpush1.bf16.msra.mxu0 0
    %89 = vmatprep.mubr.bf16.mxu0 0
    %90 = vmatmul.mubr.bf16.gmra.mrb[0].mxu0 %v52
    %v91 = vpop.f32.mrb[0].mxu0
    %v92 = vadd.f32 0.0, %v91
    %v93 = vpop.f32.mrb[0].mxu0
    %v94 = vpop.f32.mrb[0].mxu0
    %v95 = vadd.f32 0.0, %v94
    %v96 = vpop.f32.mrb[0].mxu0
    %97 = vmatprep.mubr.bf16.mxu0 0
    %98 = vmatmul.mubr.bf16.gmra.mrb[0].mxu0 %v55
    %v99 = vpop.f32.mrb[0].mxu0
    %v100 = vadd.f32 0.0, %v99
    %v101 = vpop.f32.mrb[0].mxu0
    %v102 = vpop.f32.mrb[0].mxu0
    %v103 = vadd.f32 0.0, %v102
    %v104 = vpop.f32.mrb[0].mxu0
    %105 = vdwg.mxu0
    %v106 = vadd.f32 %v24, %v92
    %v107 = vadd.f32 %v25, %v95
    %v108 = vadd.f32 %v26, %v100
    %v109 = vadd.f32 %v27, %v103
    %110 = vst [vmem:[#allocation2] sm:$0xff] %v106
    %111 = vst [vmem:[#allocation2 + $0x8] sm:$0xff] %v107
    %112 = vst [vmem:[#allocation2 + $0x10] sm:$0xff] %v108
    %113 = vst [vmem:[#allocation2 + $0x18] sm:$0xff] %v109
    // Predicated region
    $region18: #{tpu_custom_call.1} parent=1 // pred_check
      %p114 = pneg %p16
    $region19: #{tpu_custom_call.1} parent=1 // pred_check_branch
      %116 = sbr.rel (%p114) target = $region21
    $region20: #{tpu_custom_call.1} parent=1 // pred_region
      %v117 = vld [vmem:[#allocation2] sm:$0xff]
      %v118 = vld [vmem:[#allocation2 + $0x8] sm:$0xff]
      %v119 = vld [vmem:[#allocation2 + $0x10] sm:$0xff]
      %v120 = vld [vmem:[#allocation2 + $0x18] sm:$0xff]
      %v121 = vld [vmem:[%s2] sm:$0x1]
      %v123 = vlaneseq
      %v124 = vshrl.u32 %v123, 7
      %v125 = vsub.s32 0, %v124
      %v126 = vrot.slane %v121, %v125
      %v128 = vadd.f32 %v117, %v126
      %v129 = vadd.f32 %v118, %v126
      %v130 = vadd.f32 %v119, %v126
      %v131 = vadd.f32 %v120, %v126
      %v132 = vpack.c.bf16 %v129, %v128
      %v133 = vpack.c.bf16 %v131, %v130
      %v136 = vunpack.c.l.b16 %v132
      %v137 = vunpack.c.h.b16 %v132
      %v138 = vunpack.c.l.b16 %v133
      %v139 = vunpack.c.h.b16 %v133
      %v140 = vpack.c.b16 %v136, %v136
      %v141 = vpack.c.b16 %v137, %v137
      %v142 = vpack.c.b16 %v138, %v138
      %v143 = vpack.c.b16 %v139, %v139
      %148 = vst [vmem:[#allocation3] sm:$0xf] %v140
      %149 = vst [vmem:[#allocation3 + $0x4] sm:$0xf] %v141
      %150 = vst [vmem:[#allocation3 + $0x8] sm:$0xf] %v142
      %151 = vst [vmem:[#allocation3 + $0xc] sm:$0xf] %v143
    $region21: #{tpu_custom_call.1} parent=1 // pred_fallthru
      _
    // Predicated region
    $region22: #{tpu_custom_call.1} parent=1 // pred_check
      _
    $region23: #{tpu_custom_call.1} parent=1 // pred_check_branch
      %153 = sbr.rel (0) target = $region25
    $region24: #{tpu_custom_call.1} parent=1 // pred_region
      %s155 = ssub.s32 256, 256
      %156 = vsyncadd [#allocation4], %s155
      %s157 = sshll.u32 [#allocation3], 4
      %s158 = int_to_ptr.vmem [resolvable:$true] %s157
      %163 = dma.vmem_to_hbm [thread:$0]  %s158, 256, %s3, [#allocation4], 64, 64, 4
    $region25: #{tpu_custom_call.1} parent=1 // pred_fallthru
      _
    // Predicated region
    $region26: #{tpu_custom_call.1} parent=1 // pred_check
      _
    $region27: #{tpu_custom_call.1} parent=1 // pred_check_branch
      %165 = sbr.rel (0) target = $region29
    $region28: #{tpu_custom_call.1} parent=1 // pred_region
      %166 = dma.done [#allocation4], 256
    $region29: #{tpu_custom_call.1} parent=1 // pred_fallthru
      _
    %167 = vsyncpa [#allocation4], 1

</llo_original>
